<compile_context>
chip_gen: v7x
topology: tpu7x:2x2x1
jax: 0.10.0
libtpu: 0.0.40
codegen_flags: <defaults>
</compile_context>

<pallas_src>
import functools

import numpy as np
import jax
import jax.numpy as jnp
from jax import lax
from jax.experimental import pallas as pl
from jax.experimental.pallas import tpu as pltpu


# ----------------------------------------------------------------------------
# helpers
# ----------------------------------------------------------------------------
def _round_up(x, m):
    return ((x + m - 1) // m) * m


def _default_tile():
    # 256 matches the v6e/v7x 2x256x256 MXU; 128 already fills v5e's 4x128x128.
    try:
        kind = jax.devices()[0].device_kind.lower()
        if "v5 lite" in kind or "v5e" in kind or "v5litepod" in kind:
            return 128
    except Exception:
        pass
    return 256


# ----------------------------------------------------------------------------
# Kernel 1: noise rows — clamp(item, -1, 1) + noise_item, gathered rows only
# ----------------------------------------------------------------------------
def _clamp_add_kernel(x_ref, n_ref, o_ref):
    o_ref[...] = jnp.clip(x_ref[...], -1.0, 1.0) + n_ref[...]


def clamp_add_rows(x, noise, *, block_rows=2048):
    rows, d = x.shape
    r8 = _round_up(rows, 8)
    br = r8 if r8 <= block_rows else block_rows
    r_pad = _round_up(rows, br)
    xp = jnp.pad(x, ((0, r_pad - rows), (0, 0)))
    npad = jnp.pad(noise, ((0, r_pad - rows), (0, 0)))
    out = pl.pallas_call(
        _clamp_add_kernel,
        out_shape=jax.ShapeDtypeStruct((r_pad, d), x.dtype),
        grid=(r_pad // br,),
        in_specs=[pl.BlockSpec((br, d), lambda r: (r, 0)),
                  pl.BlockSpec((br, d), lambda r: (r, 0))],
        out_specs=pl.BlockSpec((br, d), lambda r: (r, 0)),
        compiler_params=pltpu.CompilerParams(dimension_semantics=("parallel",)),
    )(xp, npad)
    return out[:rows]


# ----------------------------------------------------------------------------
# Kernel 2: fused two-direction max-cosine-similarity, grid-tiled
#   rowmax[i] = max_j cos(a[i], b[j])   colmax[j] = max_i cos(a[i], b[j])
# ----------------------------------------------------------------------------
def _cos_max_kernel(a_ref, b_ref, rowmax_ref, colmax_ref, *,
                    tm, tn, true_m, true_n, m_pad, n_pad):
    i = pl.program_id(0)        # tiles over rows of a (rowmax blocks)
    j = pl.program_id(1)        # tiles over rows of b (reduction axis of rowmax)

    a = a_ref[...].astype(jnp.float32)                          # (tm, D)
    b = b_ref[...].astype(jnp.float32)                          # (tn, D)
    # Pre-normalise rows (rsqrt runs on the EUP slot).  NOTE: eps differs very
    # slightly from torch's 1e-8 norm clamp; irrelevant away from zero norms.
    a_n = (a * lax.rsqrt(jnp.sum(a * a, axis=-1, keepdims=True) + 1e-12)
           ).astype(jnp.bfloat16)
    b_n = (b * lax.rsqrt(jnp.sum(b * b, axis=-1, keepdims=True) + 1e-12)
           ).astype(jnp.bfloat16)
    # bf16 MXU matmul, f32 accumulate; contract last dims (no explicit transpose).
    cos = lax.dot_general(a_n, b_n, (((1,), (1,)), ((), ())),
                          preferred_element_type=jnp.float32)   # (tm, tn)

    if true_m != m_pad or true_n != n_pad:
        # Mask zero-padded rows/cols so they can never win a max.
        rmask = (i * tm + lax.broadcasted_iota(jnp.int32, (tm, 1), 0)) < true_m
        cmask = (j * tn + lax.broadcasted_iota(jnp.int32, (1, tn), 1)) < true_n
        cos = jnp.where(rmask & cmask, cos, -jnp.inf)

    # rowmax: blocked accumulator output, resident across the inner j axis.
    # (kept in (M,1) layout: written once per i-tile, negligible vs MXU work,
    #  and only a scalar count ever crosses back to the host.)
    @pl.when(j == 0)
    def _():
        rowmax_ref[...] = jnp.full((tm, 1), -jnp.inf, jnp.float32)
    rowmax_ref[...] = jnp.maximum(rowmax_ref[...],
                                  jnp.max(cos, axis=1, keepdims=True))

    # colmax: lane-dense (1, n_pad) output resident for the whole grid; the
    # j-th 128-aligned lane slice is initialised on its first visit (i == 0).
    off_n = pl.multiple_of(j * tn, tn)
    tile_colmax = jnp.max(cos, axis=0, keepdims=True)            # (1, tn)
    @pl.when(i == 0)
    def _():
        colmax_ref[:, pl.ds(off_n, tn)] = jnp.full((1, tn), -jnp.inf, jnp.float32)
    colmax_ref[:, pl.ds(off_n, tn)] = jnp.maximum(
        colmax_ref[:, pl.ds(off_n, tn)], tile_colmax)


def max_cosine_similarity_both(e1, e2, *, tile=None):
    m, d = e1.shape
    n = e2.shape[0]
    if m == 0 or n == 0:
        return jnp.zeros((m,), jnp.float32), jnp.zeros((n,), jnp.float32)
    if tile is None:
        tile = _default_tile()
    tm = tn = tile
    m_pad = _round_up(m, tm)
    n_pad = _round_up(n, tn)
    a = jnp.pad(e1.astype(jnp.bfloat16), ((0, m_pad - m), (0, 0)))
    b = jnp.pad(e2.astype(jnp.bfloat16), ((0, n_pad - n), (0, 0)))
    kernel = functools.partial(_cos_max_kernel, tm=tm, tn=tn,
                               true_m=m, true_n=n, m_pad=m_pad, n_pad=n_pad)
    rowmax, colmax = pl.pallas_call(
        kernel,
        out_shape=(jax.ShapeDtypeStruct((m_pad, 1), jnp.float32),
                   jax.ShapeDtypeStruct((1, n_pad), jnp.float32)),
        grid=(m_pad // tm, n_pad // tn),
        in_specs=[pl.BlockSpec((tm, d), lambda i, j: (i, 0)),
                  pl.BlockSpec((tn, d), lambda i, j: (j, 0))],
        out_specs=(pl.BlockSpec((tm, 1), lambda i, j: (i, 0)),
                   pl.BlockSpec((1, n_pad), lambda i, j: (0, 0))),
        compiler_params=pltpu.CompilerParams(
            # Each grid axis is the reduction axis of one of the fused outputs,
            # so neither may be megacore-"parallel".
            dimension_semantics=("arbitrary", "arbitrary"),
            vmem_limit_bytes=32 * 1024 * 1024),
    )(a, b)
    return rowmax[:m, 0], colmax[0, :n]


# ----------------------------------------------------------------------------
# Kernel 3: all three BPR losses + L2 terms, batch-tiled, packed (1,8) output
# ----------------------------------------------------------------------------
def _log_sigmoid(x):
    # log(sigmoid(x)) = min(x, 0) - log(1 + exp(-|x|))   (overflow-safe)
    return jnp.minimum(x, 0.0) - jnp.log(1.0 + jnp.exp(-jnp.abs(x)))


def _bpr_all_kernel(u_ref, ai_ref, aj_ref, j_ref,
                    mu_ref, mp_ref, mn_ref,
                    fu_ref, fp_ref, fn_ref,
                    out_ref,
                    s_ls_all, s_l2_all, s_ls_m, s_l2_m, s_ls_f, s_l2_f,
                    *, tb, n_full, n_male, n_female):
    t = pl.program_id(0)
    nt = pl.num_programs(0)
    row = t * tb + lax.broadcasted_iota(jnp.int32, (tb, 1), 0)

    @pl.when(t == 0)
    def _():
        for s in (s_ls_all, s_l2_all, s_ls_m, s_l2_m, s_ls_f, s_l2_f):
            s[...] = jnp.zeros_like(s)

    def ls_sum(u_r, pos_r, neg_r, count):
        # Each group's tiles are loaded, reduced and dropped immediately
        # (short vreg live ranges; review vreg-pressure item).
        u = u_r[...].astype(jnp.float32)
        pos = pos_r[...].astype(jnp.float32)
        neg = neg_r[...].astype(jnp.float32)
        diff = jnp.sum(u * (pos - neg), axis=-1, keepdims=True)       # (tb, 1)
        valid = (row < count).astype(jnp.float32)                     # mask pads
        return jnp.sum(_log_sigmoid(diff) * valid, axis=0, keepdims=True)  # (1,1)

    def sq_sum(x_r):
        x = x_r[...].astype(jnp.float32)                              # pads are 0
        return jnp.sum(jnp.sum(x * x, axis=-1, keepdims=True),
                       axis=0, keepdims=True)                         # (1,1)

    s_ls_all[...] += ls_sum(u_ref, ai_ref, aj_ref, n_full)
    s_l2_all[...] += sq_sum(u_ref) + sq_sum(ai_ref) + sq_sum(j_ref)
    s_ls_m[...] += ls_sum(mu_ref, mp_ref, mn_ref, n_male)
    s_l2_m[...] += sq_sum(mp_ref)
    s_ls_f[...] += ls_sum(fu_ref, fp_ref, fn_ref, n_female)
    s_l2_f[...] += sq_sum(fp_ref)

    @pl.when(t == nt - 1)
    def _():
        # Finalize with the TRUE group counts (padded rows never entered sums).
        inv_b = 1.0 / float(max(n_full, 1))
        inv_m = 1.0 / float(max(n_male, 1))
        inv_f = 1.0 / float(max(n_female, 1))
        lane = lax.broadcasted_iota(jnp.int32, (1, 8), 1)

        def put(k, v):  # place a (1,1) value at lane k of the packed (1,8) output
            return jnp.where(lane == k, v, jnp.zeros((1, 8), jnp.float32))

        out_ref[...] = (put(0, -inv_b * s_ls_all[...])
                        + put(1, 0.01 * inv_b * s_l2_all[...])
                        + put(2, -inv_m * s_ls_m[...])
                        + put(3, 0.01 * inv_m * s_l2_m[...])
                        + put(4, -inv_f * s_ls_f[...])
                        + put(5, 0.01 * inv_f * s_l2_f[...]))


def bpr_all_losses(u, add_i, add_j, j_e, mu, m_pos, m_neg, fu, f_pos, f_neg, *, tb=256):
    """Returns a (1,8) f32 array:
       [loss_add, l2, loss_fake_male, l2_male, loss_fake_female, l2_female, 0, 0]."""
    n_full, d = u.shape
    n_male = mu.shape[0]
    n_female = fu.shape[0]
    tb = min(tb, _round_up(n_full, 8))        # review: keep tile rows <= 256
    b_pad = _round_up(n_full, tb)

    def prep(x):
        # bf16 feed halves HBM traffic; zero-pad every group to the common
        # padded batch so all ten inputs share one grid.
        return jnp.pad(x.astype(jnp.bfloat16), ((0, b_pad - x.shape[0]), (0, 0)))

    ins = [prep(x) for x in (u, add_i, add_j, j_e, mu, m_pos, m_neg, fu, f_pos, f_neg)]
    kernel = functools.partial(_bpr_all_kernel, tb=tb, n_full=n_full,
                               n_male=n_male, n_female=n_female)
    return pl.pallas_call(
        kernel,
        out_shape=jax.ShapeDtypeStruct((1, 8), jnp.float32),
        grid=(b_pad // tb,),
        in_specs=[pl.BlockSpec((tb, d), lambda t: (t, 0)) for _ in ins],
        out_specs=pl.BlockSpec((1, 8), lambda t: (0, 0)),
        scratch_shapes=[pltpu.VMEM((1, 1), jnp.float32) for _ in range(6)],
        compiler_params=pltpu.CompilerParams(
            dimension_semantics=("arbitrary",),   # batch axis is a reduction
            vmem_limit_bytes=32 * 1024 * 1024),
    )(*ins)


# ----------------------------------------------------------------------------
# FairData module (forward semantics of the PyTorch reference)
# ----------------------------------------------------------------------------
class FairDataPallas:
    def __init__(self, user_num, item_num, factor_num, users_features,
                 similarity, b, key):
        self.user_num = user_num
        self.item_num = item_num
        self.factor_num = factor_num
        self.similarity = float(similarity)
        self.b = float(b)
        self.users_features = np.asarray(users_features)[:, 0].astype(np.int64)
        self.tile = _default_tile()

        k1, k2, k3 = jax.random.split(key, 3)
        init = lambda k, rows: 0.01 * jax.random.normal(k, (rows, factor_num), jnp.float32)
        # D=64 kept un-padded: a full-extent last dim is a legal TPU block and
        # f32 padding to 128 lanes would only waste HBM bandwidth.
        self.embed_user = init(k1, user_num)
        self.embed_item = init(k2, item_num)
        self.noise_item = init(k3, item_num)

    # -- noise(): slicing / mean(avg_len=1) / tiling helper (pure glue) --
    def noise(self, male_noise_i_emb, female_noise_i_emb):
        d = male_noise_i_emb.shape[1]
        male_len = male_noise_i_emb.shape[0]
        female_len = female_noise_i_emb.shape[0]
        avg_len = 1

        male_end_idx = male_len % avg_len + avg_len
        male_mean = male_noise_i_emb[:-male_end_idx].reshape(-1, avg_len, d).mean(axis=1)
        male_noise_len = male_mean.shape[0]
        if male_noise_len > female_len:
            female_like = male_mean[:female_len]
        else:
            expand = int(female_len / male_noise_len) + 1
            female_like = jnp.tile(male_mean, (expand, 1))[:female_len]

        female_end_idx = female_len % avg_len + avg_len
        female_mean = female_noise_i_emb[:-female_end_idx].reshape(-1, avg_len, d).mean(axis=1)
        female_noise_len = female_mean.shape[0]
        if female_noise_len > male_len:
            male_like = female_mean[:male_len]
        else:
            expand = int(male_len / female_noise_len) + 1
            male_like = jnp.tile(female_mean, (expand, 1))[:male_len]

        return male_like, female_like

    def forward(self, adj_pos, u_batch, i_batch, j_batch):
        del adj_pos                                   # unused, as in the reference
        u_batch = np.asarray(u_batch)
        i_batch = np.asarray(i_batch)
        j_batch = np.asarray(j_batch)
        bsz = u_batch.shape[0]

        gender = self.users_features[u_batch]         # host, data-dependent split
        male_idx = np.where(gender != 0)[0]
        female_idx = np.where(gender == 0)[0]

        u_idx = jnp.asarray(u_batch)
        i_idx = jnp.asarray(i_batch)
        j_idx = jnp.asarray(j_batch)
        u_emb = jnp.take(self.embed_user, u_idx, axis=0)
        i_emb = jnp.take(self.embed_item, i_idx, axis=0)
        j_emb = jnp.take(self.embed_item, j_idx, axis=0)

        # clamp+add noise ONLY for the gathered rows (no full item-table pass).
        noise_rows = clamp_add_rows(
            jnp.concatenate([i_emb, j_emb], axis=0),
            jnp.concatenate([jnp.take(self.noise_item, i_idx, axis=0),
                             jnp.take(self.noise_item, j_idx, axis=0)], axis=0))
        noise_i_emb2 = noise_rows[:bsz]
        noise_j_emb2 = noise_rows[bsz:]

        # NOTE: like the reference, assumes 0 < int(batch*b) < batch.
        len_noise = int(bsz * self.b)
        add_emb = jnp.concatenate([i_emb[:bsz - len_noise],
                                   noise_i_emb2[bsz - len_noise:]], axis=0)
        add_emb_j = jnp.concatenate([noise_j_emb2[bsz - len_noise:],
                                     j_emb[:bsz - len_noise]], axis=0)

        m_sel = jnp.asarray(male_idx)
        f_sel = jnp.asarray(female_idx)
        male_u_emb = jnp.take(u_emb, m_sel, axis=0)
        female_u_emb = jnp.take(u_emb, f_sel, axis=0)
        male_i_emb = jnp.take(i_emb, m_sel, axis=0)
        female_i_emb = jnp.take(i_emb, f_sel, axis=0)
        male_j_emb = jnp.take(j_emb, m_sel, axis=0)
        female_j_emb = jnp.take(j_emb, f_sel, axis=0)
        male_noise_i_emb = jnp.take(noise_i_emb2, m_sel, axis=0)
        female_noise_i_emb = jnp.take(noise_i_emb2, f_sel, axis=0)

        # fake_pos in both directions: one fused tiled kernel; only two scalar
        # counts are synced to the host (common empty-set fast path).
        if male_i_emb.shape[0] > 0 and female_i_emb.shape[0] > 0:
            row_max, col_max = max_cosine_similarity_both(
                male_i_emb, female_i_emb, tile=self.tile)
            n_female_like = jnp.sum(row_max < self.similarity)  # |fake_pos(male,female)|
            n_male_like = jnp.sum(col_max < self.similarity)    # |fake_pos(female,male)|
        else:
            n_female_like = n_male_like = jnp.zeros((), jnp.int32)

        # Dispatch the (common) noise-fallback work BEFORE the host sync so the
        # tiny scalar transfer overlaps device work.
        male_noise_emb, female_noise_emb = self.noise(male_noise_i_emb,
                                                      female_noise_i_emb)
        packed = bpr_all_losses(
            u_emb, add_emb, add_emb_j, j_emb,
            male_u_emb, male_noise_emb, male_j_emb,
            female_u_emb, female_noise_emb, female_j_emb)

        nf, nm = jax.device_get((n_female_like, n_male_like))   # 8-byte sync
        if int(nf) != 0 or int(nm) != 0:
            # TODO(synk): in-forward GAN training (100 Adam epochs on
            # Discriminator/Generator + BCE + torch.save) is untranslatable.
            raise NotImplementedError("GAN branch of FairData.forward not supported")

        loss_add, l2_regulization = packed[0, 0], packed[0, 1]
        loss_fake_male, l2_male = packed[0, 2], packed[0, 3]
        loss_fake_female, l2_female = packed[0, 4], packed[0, 5]

        loss_fake = loss_fake_male + loss_fake_female
        l2_regulization2 = l2_male + l2_female
        loss_task = 1.0 * loss_add + l2_regulization
        loss_add_item = loss_fake + l2_regulization2
        return [loss_task, l2_regulization, loss_add_item]


# ----------------------------------------------------------------------------
# Pure-jnp (no Pallas) reference of forward's fallback path, for validation
# ----------------------------------------------------------------------------
def reference_forward(model, u_batch, i_batch, j_batch):
    u_batch = np.asarray(u_batch); i_batch = np.asarray(i_batch); j_batch = np.asarray(j_batch)
    bsz = u_batch.shape[0]
    gender = model.users_features[u_batch]
    male_idx = jnp.asarray(np.where(gender != 0)[0])
    female_idx = jnp.asarray(np.where(gender == 0)[0])

    u_emb = jnp.take(model.embed_user, jnp.asarray(u_batch), axis=0)
    i_emb = jnp.take(model.embed_item, jnp.asarray(i_batch), axis=0)
    j_emb = jnp.take(model.embed_item, jnp.asarray(j_batch), axis=0)
    noise_i = jnp.clip(i_emb, -1.0, 1.0) + jnp.take(model.noise_item, jnp.asarray(i_batch), axis=0)
    noise_j = jnp.clip(j_emb, -1.0, 1.0) + jnp.take(model.noise_item, jnp.asarray(j_batch), axis=0)

    ln = int(bsz * model.b)
    add_emb = jnp.concatenate([i_emb[:bsz - ln], noise_i[bsz - ln:]], 0)
    add_emb_j = jnp.concatenate([noise_j[bsz - ln:], j_emb[:bsz - ln]], 0)

    male_u = jnp.take(u_emb, male_idx, 0); female_u = jnp.take(u_emb, female_idx, 0)
    male_j = jnp.take(j_emb, male_idx, 0); female_j = jnp.take(j_emb, female_idx, 0)
    male_noise_i = jnp.take(noise_i, male_idx, 0); female_noise_i = jnp.take(noise_i, female_idx, 0)
    male_noise_emb, female_noise_emb = model.noise(male_noise_i, female_noise_i)

    def bpr(u, pos, neg):
        return -jnp.mean(jax.nn.log_sigmoid(jnp.sum(u * pos, -1) - jnp.sum(u * neg, -1)))

    loss_add = bpr(u_emb, add_emb, add_emb_j)
    l2 = 0.01 * jnp.mean(jnp.sum(u_emb ** 2 + add_emb ** 2 + j_emb ** 2, -1))
    loss_m = bpr(male_u, male_noise_emb, male_j)
    loss_f = bpr(female_u, female_noise_emb, female_j)
    l2_2 = (0.01 * jnp.mean(jnp.sum(male_noise_emb ** 2, -1))
            + 0.01 * jnp.mean(jnp.sum(female_noise_emb ** 2, -1)))
    return [loss_add + l2, l2, loss_m + loss_f + l2_2]


# ----------------------------------------------------------------------------
if __name__ == "__main__":
    key = jax.random.PRNGKey(0)
    k_params, k_i, k_j = jax.random.split(key, 3)

    user_num, item_num, factor_num = 16, 32, 64
    batch = 8
    genders = np.array([1, 1, 1, 0, 0, 1, 0, 1, 0, 1, 1, 0, 0, 1, 0, 1], np.int64)
    users_features = np.stack([genders, np.zeros(user_num, np.int64)], axis=1)

    similarity = -1.5   # cos >= -1 always  =>  fake_pos sets empty  =>  noise path
    b = 0.25

    model = FairDataPallas(user_num, item_num, factor_num, users_features,
                           similarity, b, k_params)

    u_batch = np.arange(batch, dtype=np.int32)
    i_batch = np.asarray(jax.random.randint(k_i, (batch,), 0, item_num), np.int32)
    j_batch = np.asarray(jax.random.randint(k_j, (batch,), 0, item_num), np.int32)

    losses = model.forward(None, u_batch, i_batch, j_batch)
    jax.block_until_ready(losses)
    assert all(np.isfinite(np.asarray(l)) for l in losses)

    # forward vs. pure-jnp reference (bf16 kernel feeds -> loose tolerance)
    ref = reference_forward(model, u_batch, i_batch, j_batch)
    np.testing.assert_allclose(np.asarray(jnp.stack(losses)),
                               np.asarray(jnp.stack(ref)), rtol=5e-2, atol=1e-5)

    # multi-tile cosine-max kernel vs. jnp reference (exercises tiling/masking)
    ka, kb = jax.random.split(jax.random.PRNGKey(1))
    a = jax.random.normal(ka, (300, factor_num), jnp.float32)
    c = jax.random.normal(kb, (520, factor_num), jnp.float32)
    rm, cm = max_cosine_similarity_both(a, c, tile=model.tile)
    a_n = a / jnp.linalg.norm(a, axis=1, keepdims=True)
    c_n = c / jnp.linalg.norm(c, axis=1, keepdims=True)
    cos = a_n @ c_n.T
    np.testing.assert_allclose(np.asarray(rm), np.asarray(cos.max(axis=1)), atol=3e-2, rtol=0)
    np.testing.assert_allclose(np.asarray(cm), np.asarray(cos.max(axis=0)), atol=3e-2, rtol=0)

    # multi-tile masked BPR kernel vs. jnp reference
    kk = jax.random.split(jax.random.PRNGKey(2), 10)
    n_b, n_m, n_f = 600, 371, 229
    mk = lambda k, n: 0.05 * jax.random.normal(k, (n, factor_num), jnp.float32)
    args10 = [mk(kk[0], n_b), mk(kk[1], n_b), mk(kk[2], n_b), mk(kk[3], n_b),
              mk(kk[4], n_m), mk(kk[5], n_m), mk(kk[6], n_m),
              mk(kk[7], n_f), mk(kk[8], n_f), mk(kk[9], n_f)]
    packed = bpr_all_losses(*args10)
    u_t, ai_t, aj_t, jj_t, mu_t, mp_t, mn_t, fu_t, fp_t, fn_t = args10

    def _bpr_ref(u, pos, neg):
        return -jnp.mean(jax.nn.log_sigmoid(jnp.sum(u * (pos - neg), axis=-1)))

    ref6 = jnp.stack([
        _bpr_ref(u_t, ai_t, aj_t),
        0.01 * jnp.mean(jnp.sum(u_t ** 2 + ai_t ** 2 + jj_t ** 2, axis=-1)),
        _bpr_ref(mu_t, mp_t, mn_t),
        0.01 * jnp.mean(jnp.sum(mp_t ** 2, axis=-1)),
        _bpr_ref(fu_t, fp_t, fn_t),
        0.01 * jnp.mean(jnp.sum(fp_t ** 2, axis=-1))])
    np.testing.assert_allclose(np.asarray(packed)[0, :6], np.asarray(ref6),
                               rtol=5e-2, atol=1e-4)

    print("KERNEL_OK")
</pallas_src>

<mosaic_0001>
module attributes {stable_mosaic.version = 11 : i64} {
  func.func @_clamp_add_kernel(%arg0: i32, %arg1: memref<16x64xf32, #tpu.memory_space<vmem>>, %arg2: memref<16x64xf32, #tpu.memory_space<vmem>>, %arg3: memref<16x64xf32, #tpu.memory_space<vmem>>) attributes {dimension_semantics = [#tpu.dimension_semantics<parallel>], iteration_bounds = array<i64: 1>, scalar_prefetch = 0 : i64, scratch_operands = 0 : i64, tpu.core_type = #tpu.core_type<tc>, window_params = [{transform_indices = @transform_0, window_bounds = array<i64: 16, 64>}, {transform_indices = @transform_1, window_bounds = array<i64: 16, 64>}, {transform_indices = @transform_2, window_bounds = array<i64: 16, 64>}]} {
    %c0 = arith.constant 0 : index
    %c0_0 = arith.constant 0 : index
    %0 = vector.load %arg1[%c0, %c0_0] : memref<16x64xf32, #tpu.memory_space<vmem>>, vector<16x64xf32>
    %cst = arith.constant -1.000000e+00 : f32
    %cst_1 = arith.constant 1.000000e+00 : f32
    %1 = vector.broadcast %cst : f32 to vector<16x64xf32>
    %2 = arith.maximumf %1, %0 : vector<16x64xf32>
    %3 = vector.broadcast %cst_1 : f32 to vector<16x64xf32>
    %4 = arith.minimumf %3, %2 : vector<16x64xf32>
    %c0_2 = arith.constant 0 : index
    %c0_3 = arith.constant 0 : index
    %5 = vector.load %arg2[%c0_2, %c0_3] : memref<16x64xf32, #tpu.memory_space<vmem>>, vector<16x64xf32>
    %6 = arith.addf %4, %5 : vector<16x64xf32>
    %c0_4 = arith.constant 0 : index
    %c0_5 = arith.constant 0 : index
    %7 = vector.load %arg3[%c0_4, %c0_5] : memref<16x64xf32, #tpu.memory_space<vmem>>, vector<16x64xf32>
    tpu.vector_store %arg3[%c0_4, %c0_5], %6 {strides = array<i32>} : memref<16x64xf32, #tpu.memory_space<vmem>>, vector<16x64xf32>,
    return
  }
  func.func @transform_0(%arg0: i32) -> (i32, i32) {
    %c0_i32 = arith.constant 0 : i32
    %c0_i32_0 = arith.constant 0 : i32
    return %arg0, %c0_i32 : i32, i32
  }
  func.func @transform_1(%arg0: i32) -> (i32, i32) {
    %c0_i32 = arith.constant 0 : i32
    %c0_i32_0 = arith.constant 0 : i32
    return %arg0, %c0_i32 : i32, i32
  }
  func.func @transform_2(%arg0: i32) -> (i32, i32) {
    %c0_i32 = arith.constant 0 : i32
    %c0_i32_0 = arith.constant 0 : i32
    return %arg0, %c0_i32 : i32, i32
  }
}

</mosaic_0001>

<llo_original>
// kernel: tpu_custom_call.1
$region0: #{tpu_custom_call.1}
  #allocation0 [shape = 'u32[]', space=smem, size = 0x4, offset = 0x4, fixed_abs, tag = 'smem constant byte address 0x4 - core index']
  #allocation1 [shape = 'u32[144,128]{1,0:T(1,128)}', space=vmem, size = 0x12000, scoped, tag = 'internal scratch']
  %s0 = inlined_call_operand.hbm [shape: f32[16,64], index: 0, kind: input, shape index: {}]
  %s1 = inlined_call_operand.hbm [shape: f32[16,64], index: 1, kind: input, shape index: {}]
  %s2 = inlined_call_operand.hbm [shape: f32[16,64], index: 2, kind: output, shape index: {}]
  %s3 = sld [smem:[#allocation0]]
  $region26: #{tpu_custom_call.1} parent=0
    _
  %s5 = ssub.s32 1, %s3
  %s6 = scalar_select 0, %s5, %s3
  $region1: #{tpu_custom_call.1} parent=0
    #allocation2 [shape = 'u8[8192]{0}', space=vmem, size = 0x2000, scoped, tag = 'input window, operand 0, single buffered']
    #allocation3 [shape = 's32[1]{0}', space=sflag, size = 0x4, scoped, tag = 'scoped memory for tpu_custom_call.1']
    #allocation4 [shape = 's32[1]{0}', space=sflag, size = 0x4, scoped, tag = 'scoped memory for tpu_custom_call.1']
    #allocation5 [shape = 'u8[8192]{0}', space=vmem, size = 0x2000, scoped, tag = 'input window, operand 1, single buffered']
    #allocation6 [shape = 's32[1]{0}', space=sflag, size = 0x4, scoped, tag = 'scoped memory for tpu_custom_call.1']
    #allocation7 [shape = 'u8[8192]{0}', space=vmem, size = 0x2000, scoped, tag = 'output window, operand 0, single buffered']
    %7 = vsyncpa [#allocation3], 0
    %8 = vsyncpa [#allocation6], 0
    %9 = vsyncpa [#allocation4], 0
    // Predicated region
    $region2: #{tpu_custom_call.1} parent=1 // pred_check
      _
    $region3: #{tpu_custom_call.1} parent=1 // pred_check_branch
      %11 = sbr.rel (0) target = $region5
    $region4: #{tpu_custom_call.1} parent=1 // pred_region
      %s13 = ssub.s32 256, 256
      %14 = vsyncadd [#allocation3], %s13
      %s15 = sshll.u32 [#allocation2], 4
      %s16 = int_to_ptr.vmem [resolvable:$true] %s15
      %21 = dma.hbm_to_vmem [thread:$0]  %s0, 256, %s16, [#allocation3], 128, 128, 8
    $region5: #{tpu_custom_call.1} parent=1 // pred_fallthru
      _
    // Predicated region
    $region6: #{tpu_custom_call.1} parent=1 // pred_check
      _
    $region7: #{tpu_custom_call.1} parent=1 // pred_check_branch
      %23 = sbr.rel (0) target = $region9
    $region8: #{tpu_custom_call.1} parent=1 // pred_region
      %s25 = ssub.s32 256, 256
      %26 = vsyncadd [#allocation6], %s25
      %s27 = sshll.u32 [#allocation5], 4
      %s28 = int_to_ptr.vmem [resolvable:$true] %s27
      %33 = dma.hbm_to_vmem [thread:$0]  %s1, 256, %s28, [#allocation6], 128, 128, 8
    $region9: #{tpu_custom_call.1} parent=1 // pred_fallthru
      _
    // Predicated region
    $region10: #{tpu_custom_call.1} parent=1 // pred_check
      _
    $region11: #{tpu_custom_call.1} parent=1 // pred_check_branch
      %35 = sbr.rel (0) target = $region13
    $region12: #{tpu_custom_call.1} parent=1 // pred_region
      %36 = dma.done [#allocation3], 256
    $region13: #{tpu_custom_call.1} parent=1 // pred_fallthru
      _
    // Predicated region
    $region14: #{tpu_custom_call.1} parent=1 // pred_check
      _
    $region15: #{tpu_custom_call.1} parent=1 // pred_check_branch
      %38 = sbr.rel (0) target = $region17
    $region16: #{tpu_custom_call.1} parent=1 // pred_region
      %39 = dma.done [#allocation6], 256
    $region17: #{tpu_custom_call.1} parent=1 // pred_fallthru
      _
    %v40 = vld [vmem:[#allocation2] sm:$0xff]
    %v41 = vld [vmem:[#allocation2 + $0x8] sm:$0xff]
    %v42 = vmax.f32 %v40, -1.0
    %v43 = vmax.f32 %v41, -1.0
    %v44 = vmin.f32 %v42, 1.0
    %v45 = vmin.f32 %v43, 1.0
    %v46 = vld [vmem:[#allocation5] sm:$0xff]
    %v47 = vld [vmem:[#allocation5 + $0x8] sm:$0xff]
    %v48 = vadd.f32 %v44, %v46
    %v49 = vadd.f32 %v45, %v47
    %vm50 = vcmask 523264
    %51 = vst.msk [vmem:[#allocation7] sm:$0xff] %vm50, %v48
    %52 = vst.msk [vmem:[#allocation7 + $0x8] sm:$0xff] %vm50, %v49
    // Predicated region
    $region18: #{tpu_custom_call.1} parent=1 // pred_check
      _
    $region19: #{tpu_custom_call.1} parent=1 // pred_check_branch
      %54 = sbr.rel (0) target = $region21
    $region20: #{tpu_custom_call.1} parent=1 // pred_region
      %s56 = ssub.s32 256, 256
      %57 = vsyncadd [#allocation4], %s56
      %s58 = sshll.u32 [#allocation7], 4
      %s59 = int_to_ptr.vmem [resolvable:$true] %s58
      %64 = dma.vmem_to_hbm [thread:$0]  %s59, 256, %s2, [#allocation4], 128, 128, 8
    $region21: #{tpu_custom_call.1} parent=1 // pred_fallthru
      _
    // Predicated region
    $region22: #{tpu_custom_call.1} parent=1 // pred_check
      _
    $region23: #{tpu_custom_call.1} parent=1 // pred_check_branch
      %66 = sbr.rel (0) target = $region25
    $region24: #{tpu_custom_call.1} parent=1 // pred_region
      %67 = dma.done [#allocation4], 256
    $region25: #{tpu_custom_call.1} parent=1 // pred_fallthru
      _
    %68 = vsyncpa [#allocation3], 1
    %69 = vsyncpa [#allocation6], 1
    %70 = vsyncpa [#allocation4], 1

</llo_original>
